<compile_context>
chip_gen: v7x
topology: tpu7x:2x2x1
jax: 0.10.0
libtpu: 0.0.40
codegen_flags: <defaults>
</compile_context>

<pallas_src>
import functools

import jax
import jax.numpy as jnp
from jax.experimental import pallas as pl
from jax.experimental.pallas import tpu as pltpu


def _round_up(x, m):
    return ((x + m - 1) // m) * m


def _vmem_capacity_bytes():
    try:
        return int(pltpu.get_tpu_info().vmem_capacity_bytes)
    except Exception:
        return 128 << 20  # assume v5e/v6e if the query is unavailable


def _ff_kernel(x_ref, w1_ref, b1_ref, w2_ref, b2_ref, o_ref, acc_ref):
    # x_ref:  (tm, d_model_p)    w1_ref: (d_model_p, tk)   b1_ref: (1, tk)
    # w2_ref: (tk, d_model_p)    b2_ref: (1, d_model_p)    o_ref:  (tm, d_model_p)
    # acc_ref: (tm, d_model_p) f32 accumulator, resident across the k axis.
    k = pl.program_id(1)

    @pl.when(k == 0)
    def _init():
        # Fold b2 into the accumulator once instead of re-adding per slab.
        acc_ref[...] = jnp.broadcast_to(
            b2_ref[...].astype(jnp.float32), acc_ref.shape)

    # Linear 1 (this d_ff slab) + bias + ReLU, f32 accumulation on the MXU.
    h = jnp.dot(x_ref[...], w1_ref[...], preferred_element_type=jnp.float32)
    h = jnp.maximum(h + b1_ref[...].astype(jnp.float32), 0.0)

    # Dropout -> identity (eval mode).

    # Linear 2 (this d_ff slab) accumulated into the f32 scratch.
    acc_ref[...] += jnp.dot(h.astype(w2_ref.dtype), w2_ref[...],
                            preferred_element_type=jnp.float32)

    @pl.when(k == pl.num_programs(1) - 1)
    def _finalize():
        o_ref[...] = acc_ref[...].astype(o_ref.dtype)


@functools.partial(jax.jit, static_argnames=("block_rows", "block_ff"))
def feed_forward(x, w1, b1, w2, b2, *, block_rows=None, block_ff=None):
    """x: (..., d_model) -> (..., d_model). W1: (d_model, d_ff), W2: (d_ff, d_model)."""
    d_model = x.shape[-1]
    d_ff = w1.shape[-1]
    lead = x.shape[:-1]
    x2d = x.reshape(-1, d_model)
    m = x2d.shape[0]

    x_bytes = jnp.dtype(x.dtype).itemsize
    w_bytes = jnp.dtype(w1.dtype).itemsize

    # Lane-dense output / (8,128)-aligned tiles: pad d_model to a multiple of 128.
    d_model_p = _round_up(d_model, 128)

    # ---- generation-aware budgets ------------------------------------------
    vmem_cap = _vmem_capacity_bytes()
    if vmem_cap <= (64 << 20):               # v7x: 64 MiB per TensorCore
        gen_soft_cap = 56 << 20
        weight_slab_budget = 16 << 20
        tm_target = 512                      # compute/HBM knee ~311 rows
    else:                                    # v5e / v6e: 128 MiB
        gen_soft_cap = 96 << 20
        weight_slab_budget = 28 << 20
        tm_target = 1024                     # v6e knee ~656 rows

    # ---- d_ff slab (contraction of the 2nd matmul) --------------------------
    if block_ff is None:
        full_w_bytes = 2 * d_model_p * d_ff * w_bytes
        if full_w_bytes <= int(0.4 * gen_soft_cap):
            # Both weight matrices fit: single k step, weights stay VMEM-resident
            # across every row tile (constant block index => no HBM re-streaming).
            tk = d_ff
        else:
            tk_cap = weight_slab_budget // (4 * d_model_p * w_bytes)
            tk = min(d_ff, max(256, int(tk_cap)))
            if tk < d_ff:
                # MXU-friendly contraction depth: multiples of 512 (floor 256).
                tk = (tk // 512) * 512 if tk >= 512 else max(256, (tk // 128) * 128)
    else:
        tk = int(block_ff)
    dff_pad = _round_up(d_ff, tk)

    # ---- row tile ------------------------------------------------------------
    if block_rows is None:
        # Packed-sublane height: 8 (f32), 16 (bf16), 32 (int8/fp8).
        sub = 8 * max(1, 4 // x_bytes)
        if m <= tm_target:
            tm = _round_up(m, sub)
        else:
            per_row = 4 * d_model_p * x_bytes + 4 * d_model_p     # x/out dbuf + f32 acc
            fixed = 4 * d_model_p * tk * w_bytes + (1 << 20)      # weight slabs + misc
            avail = max(gen_soft_cap - fixed, 256 * per_row)
            tm_fit = max(256, (avail // per_row) // 256 * 256)
            tm = min(tm_target, int(tm_fit))
    else:
        tm = int(block_rows)
    m_pad = _round_up(m, tm)

    # ---- zero-pad ragged dims (padded region contributes exactly zero) ------
    pad_m, pad_dm, pad_ff = m_pad - m, d_model_p - d_model, dff_pad - d_ff
    if pad_m or pad_dm:
        x2d = jnp.pad(x2d, ((0, pad_m), (0, pad_dm)))
    if pad_dm or pad_ff:
        w1 = jnp.pad(w1, ((0, pad_dm), (0, pad_ff)))
        w2 = jnp.pad(w2, ((0, pad_ff), (0, pad_dm)))
    if pad_ff:
        b1 = jnp.pad(b1, ((0, pad_ff),))
    if pad_dm:
        b2 = jnp.pad(b2, ((0, pad_dm),))

    b1_2d = b1.reshape(1, dff_pad)
    b2_2d = b2.reshape(1, d_model_p)

    grid = (m_pad // tm, dff_pad // tk)

    # ---- VMEM budget tied to the actual working set --------------------------
    est = (4 * tm * d_model_p * x_bytes            # x + out tiles, double-buffered
           + tm * d_model_p * 4                    # f32 accumulator
           + 4 * d_model_p * tk * w_bytes          # W1 + W2 slabs, double-buffered
           + 2 * 8 * (max(tk, 128) + d_model_p) * w_bytes)   # bias tiles
    vmem_limit = int(min(max(int(est * 1.25), 32 << 20), gen_soft_cap))
    if est > vmem_limit:                           # honor oversized user tiles
        vmem_limit = int(min(int(est * 1.15), vmem_cap - (8 << 20)))

    # ---- truthful cost estimate (incl. weight re-streaming per row tile) -----
    n_row_tiles = m_pad // tm
    weight_passes = 1 if grid[1] == 1 else n_row_tiles
    cost = pl.CostEstimate(
        flops=4 * m_pad * d_model_p * dff_pad,
        transcendentals=0,
        bytes_accessed=(2 * m_pad * d_model_p * x_bytes                     # x in, out
                        + weight_passes * 2 * d_model_p * dff_pad * w_bytes  # W1 + W2
                        + weight_passes * (dff_pad + d_model_p) * w_bytes))  # biases

    out2d = pl.pallas_call(
        _ff_kernel,
        out_shape=jax.ShapeDtypeStruct((m_pad, d_model_p), x.dtype),
        grid_spec=pltpu.PrefetchScalarGridSpec(
            num_scalar_prefetch=0,
            grid=grid,
            in_specs=[
                pl.BlockSpec((tm, d_model_p), lambda i, k: (i, 0)),   # x row tile
                pl.BlockSpec((d_model_p, tk), lambda i, k: (0, k)),   # W1 slab
                pl.BlockSpec((1, tk), lambda i, k: (0, k)),           # b1 slab
                pl.BlockSpec((tk, d_model_p), lambda i, k: (k, 0)),   # W2 slab
                pl.BlockSpec((1, d_model_p), lambda i, k: (0, 0)),    # b2
            ],
            out_specs=pl.BlockSpec((tm, d_model_p), lambda i, k: (i, 0)),
            scratch_shapes=[pltpu.VMEM((tm, d_model_p), jnp.float32)],
        ),
        compiler_params=pltpu.CompilerParams(
            dimension_semantics=("parallel", "arbitrary"),
            vmem_limit_bytes=vmem_limit),
        cost_estimate=cost,
    )(x2d, w1, b1_2d, w2, b2_2d)

    return out2d[:m, :d_model].reshape(*lead, d_model)


def init_feed_forward_params(key, d_model, d_ff, dtype=jnp.float32):
    """Mirror torch.nn.Linear default init: U(-1/sqrt(fan_in), 1/sqrt(fan_in))."""
    k1, k2, k3, k4 = jax.random.split(key, 4)
    bound1 = 1.0 / (d_model ** 0.5)
    bound2 = 1.0 / (d_ff ** 0.5)
    # Stored transposed vs torch (fan_in is the first axis here).
    w1 = jax.random.uniform(k1, (d_model, d_ff), dtype, -bound1, bound1)
    b1 = jax.random.uniform(k2, (d_ff,), dtype, -bound1, bound1)
    w2 = jax.random.uniform(k3, (d_ff, d_model), dtype, -bound2, bound2)
    b2 = jax.random.uniform(k4, (d_model,), dtype, -bound2, bound2)
    return w1, b1, w2, b2


def _reference(x, w1, b1, w2, b2):
    return jnp.maximum(x @ w1 + b1, 0.0) @ w2 + b2


if __name__ == "__main__":
    batch, seq, d_model, d_ff = 2, 8, 32, 256
    dropout = 0.1  # unused at inference (identity)

    key = jax.random.PRNGKey(0)
    kx, kp, kr = jax.random.split(key, 3)
    x = jax.random.normal(kx, (batch, seq, d_model), dtype=jnp.float32)
    w1, b1, w2, b2 = init_feed_forward_params(kp, d_model, d_ff)
    ref = _reference(x, w1, b1, w2, b2)

    # 1) default tiling: weights fully resident, single d_ff slab.
    out = feed_forward(x, w1, b1, w2, b2)
    out = jax.block_until_ready(out)
    assert out.shape == (batch, seq, d_model)
    assert jnp.allclose(out, ref, atol=1e-5, rtol=1e-5), "mismatch vs reference"

    # 2) force a multi-slab k loop (exercises accumulator init/accumulate/finalize).
    out_k = feed_forward(x, w1, b1, w2, b2, block_ff=128)
    out_k = jax.block_until_ready(out_k)
    assert jnp.allclose(out_k, ref, atol=1e-5, rtol=1e-5), "mismatch (k-tiled)"

    # 3) force multiple row tiles AND multiple k slabs (weight re-streaming path).
    out_ik = feed_forward(x, w1, b1, w2, b2, block_rows=8, block_ff=128)
    out_ik = jax.block_until_ready(out_ik)
    assert jnp.allclose(out_ik, ref, atol=1e-5, rtol=1e-5), "mismatch (i,k-tiled)"

    # 4) ragged row count (exercises zero-padding of M and d_model).
    x_r = jax.random.normal(kr, (3, 5, d_model), dtype=jnp.float32)
    out_r = feed_forward(x_r, w1, b1, w2, b2)
    out_r = jax.block_until_ready(out_r)
    ref_r = _reference(x_r, w1, b1, w2, b2)
    assert out_r.shape == (3, 5, d_model)
    assert jnp.allclose(out_r, ref_r, atol=1e-5, rtol=1e-5), "mismatch (ragged M)"

    print("KERNEL_OK")
</pallas_src>

<mosaic_0001>
module attributes {stable_mosaic.version = 11 : i64} {
  func.func @_ff_kernel(%arg0: i32, %arg1: i32, %arg2: memref<16x128xf32, #tpu.memory_space<vmem>>, %arg3: memref<128x256xf32, #tpu.memory_space<vmem>>, %arg4: memref<1x256xf32, #tpu.memory_space<vmem>>, %arg5: memref<256x128xf32, #tpu.memory_space<vmem>>, %arg6: memref<1x128xf32, #tpu.memory_space<vmem>>, %arg7: memref<16x128xf32, #tpu.memory_space<vmem>>, %arg8: memref<16x128xf32, #tpu.memory_space<vmem>>) attributes {dimension_semantics = [#tpu.dimension_semantics<parallel>, #tpu.dimension_semantics<arbitrary>], iteration_bounds = array<i64: 1, 1>, scalar_prefetch = 0 : i64, scratch_operands = 1 : i64, tpu.core_type = #tpu.core_type<tc>, window_params = [{transform_indices = @transform_0, window_bounds = array<i64: 16, 128>}, {transform_indices = @transform_1, window_bounds = array<i64: 128, 256>}, {transform_indices = @transform_2, window_bounds = array<i64: 1, 256>}, {transform_indices = @transform_3, window_bounds = array<i64: 256, 128>}, {pipeline_mode = #tpu.pipeline_mode<synchronous>, transform_indices = @transform_4, window_bounds = array<i64: 1, 128>}, {transform_indices = @transform_5, window_bounds = array<i64: 16, 128>}]} {
    %c0_i32 = arith.constant 0 : i32
    %0 = arith.cmpi eq, %arg1, %c0_i32 : i32
    %1 = arith.extui %0 : i1 to i32
    %c0_i32_0 = arith.constant 0 : i32
    %2 = arith.cmpi ne, %1, %c0_i32_0 : i32
    scf.if %2 {
      %c0_16 = arith.constant 0 : index
      %c0_17 = arith.constant 0 : index
      %19 = vector.load %arg6[%c0_16, %c0_17] : memref<1x128xf32, #tpu.memory_space<vmem>>, vector<1x128xf32>
      %20 = vector.shape_cast %19 : vector<1x128xf32> to vector<1x128xf32>
      %21 = vector.broadcast %20 : vector<1x128xf32> to vector<16x128xf32>
      %c0_18 = arith.constant 0 : index
      %c0_19 = arith.constant 0 : index
      %22 = vector.load %arg8[%c0_18, %c0_19] : memref<16x128xf32, #tpu.memory_space<vmem>>, vector<16x128xf32>
      tpu.vector_store %arg8[%c0_18, %c0_19], %21 {strides = array<i32>} : memref<16x128xf32, #tpu.memory_space<vmem>>, vector<16x128xf32>,
    } else {
    }
    %c0 = arith.constant 0 : index
    %c0_1 = arith.constant 0 : index
    %3 = vector.load %arg2[%c0, %c0_1] : memref<16x128xf32, #tpu.memory_space<vmem>>, vector<16x128xf32>
    %c0_2 = arith.constant 0 : index
    %c0_3 = arith.constant 0 : index
    %4 = vector.load %arg3[%c0_2, %c0_3] : memref<128x256xf32, #tpu.memory_space<vmem>>, vector<128x256xf32>
    %cst = arith.constant dense<0.000000e+00> : vector<16x256xf32>
    %5 = tpu.matmul %3, %4, %cst {dimension_numbers = #tpu.dot_dimension_numbers<[1], [0], [0], [1], [0, 0, 1, 1], [], []>} : vector<16x128xf32>, vector<128x256xf32>, vector<16x256xf32> -> vector<16x256xf32>
    %c0_4 = arith.constant 0 : index
    %c0_5 = arith.constant 0 : index
    %6 = vector.load %arg4[%c0_4, %c0_5] : memref<1x256xf32, #tpu.memory_space<vmem>>, vector<1x256xf32>
    %7 = vector.broadcast %6 : vector<1x256xf32> to vector<16x256xf32>
    %8 = arith.addf %5, %7 : vector<16x256xf32>
    %cst_6 = arith.constant 0.000000e+00 : f32
    %9 = vector.broadcast %cst_6 : f32 to vector<16x256xf32>
    %10 = arith.maximumf %8, %9 : vector<16x256xf32>
    %c0_7 = arith.constant 0 : index
    %c0_8 = arith.constant 0 : index
    %11 = vector.load %arg8[%c0_7, %c0_8] : memref<16x128xf32, #tpu.memory_space<vmem>>, vector<16x128xf32>
    %c0_9 = arith.constant 0 : index
    %c0_10 = arith.constant 0 : index
    %12 = vector.load %arg5[%c0_9, %c0_10] : memref<256x128xf32, #tpu.memory_space<vmem>>, vector<256x128xf32>
    %cst_11 = arith.constant dense<0.000000e+00> : vector<16x128xf32>
    %13 = tpu.matmul %10, %12, %cst_11 {dimension_numbers = #tpu.dot_dimension_numbers<[1], [0], [0], [1], [0, 0, 1, 1], [], []>} : vector<16x256xf32>, vector<256x128xf32>, vector<16x128xf32> -> vector<16x128xf32>
    %14 = arith.addf %11, %13 : vector<16x128xf32>
    %c0_12 = arith.constant 0 : index
    %c0_13 = arith.constant 0 : index
    %15 = vector.load %arg8[%c0_12, %c0_13] : memref<16x128xf32, #tpu.memory_space<vmem>>, vector<16x128xf32>
    tpu.vector_store %arg8[%c0_12, %c0_13], %14 {strides = array<i32>} : memref<16x128xf32, #tpu.memory_space<vmem>>, vector<16x128xf32>,
    %c0_i32_14 = arith.constant 0 : i32
    %16 = arith.cmpi eq, %arg1, %c0_i32_14 : i32
    %17 = arith.extui %16 : i1 to i32
    %c0_i32_15 = arith.constant 0 : i32
    %18 = arith.cmpi ne, %17, %c0_i32_15 : i32
    scf.if %18 {
      %c0_16 = arith.constant 0 : index
      %c0_17 = arith.constant 0 : index
      %19 = vector.load %arg8[%c0_16, %c0_17] : memref<16x128xf32, #tpu.memory_space<vmem>>, vector<16x128xf32>
      %c0_18 = arith.constant 0 : index
      %c0_19 = arith.constant 0 : index
      %20 = vector.load %arg7[%c0_18, %c0_19] : memref<16x128xf32, #tpu.memory_space<vmem>>, vector<16x128xf32>
      tpu.vector_store %arg7[%c0_18, %c0_19], %19 {strides = array<i32>} : memref<16x128xf32, #tpu.memory_space<vmem>>, vector<16x128xf32>,
    } else {
    }
    return
  }
  func.func @transform_0(%arg0: i32, %arg1: i32) -> (i32, i32) {
    %c0_i32 = arith.constant 0 : i32
    %c0_i32_0 = arith.constant 0 : i32
    return %arg0, %c0_i32 : i32, i32
  }
  func.func @transform_1(%arg0: i32, %arg1: i32) -> (i32, i32) {
    %c0_i32 = arith.constant 0 : i32
    %c0_i32_0 = arith.constant 0 : i32
    return %c0_i32, %arg1 : i32, i32
  }
  func.func @transform_2(%arg0: i32, %arg1: i32) -> (i32, i32) {
    %c0_i32 = arith.constant 0 : i32
    %c0_i32_0 = arith.constant 0 : i32
    return %c0_i32, %arg1 : i32, i32
  }
  func.func @transform_3(%arg0: i32, %arg1: i32) -> (i32, i32) {
    %c0_i32 = arith.constant 0 : i32
    %c0_i32_0 = arith.constant 0 : i32
    return %arg1, %c0_i32 : i32, i32
  }
  func.func @transform_4(%arg0: i32, %arg1: i32) -> (i32, i32) {
    %c0_i32 = arith.constant 0 : i32
    %c0_i32_0 = arith.constant 0 : i32
    %c0_i32_1 = arith.constant 0 : i32
    return %c0_i32, %c0_i32_0 : i32, i32
  }
  func.func @transform_5(%arg0: i32, %arg1: i32) -> (i32, i32) {
    %c0_i32 = arith.constant 0 : i32
    %c0_i32_0 = arith.constant 0 : i32
    return %arg0, %c0_i32 : i32, i32
  }
}

</mosaic_0001>

<llo_original>
// kernel: feed_forward.1
$region0: #{feed_forward.1}
  #allocation0 [shape = 'u32[]', space=smem, size = 0x4, offset = 0x4, fixed_abs, tag = 'smem constant byte address 0x4 - core index']
  #allocation1 [shape = 'u32[144,128]{1,0:T(1,128)}', space=vmem, size = 0x12000, scoped, tag = 'internal scratch']
  #allocation2 [shape = 'f32[16,128]{1,0:T(8,128)}', space=vmem, size = 0x2000, scoped, tag = 'scratch operand']
  %s0 = inlined_call_operand.vmem [shape: f32[16,128], index: 0, kind: input, shape index: {}]
  %s1 = inlined_call_operand.vmem [shape: f32[128,256], index: 1, kind: input, shape index: {}]
  %s2 = inlined_call_operand.vmem [shape: f32[1,256], index: 2, kind: input, shape index: {}]
  %s3 = inlined_call_operand.vmem [shape: f32[256,128], index: 3, kind: input, shape index: {}]
  %s4 = inlined_call_operand.vmem [shape: f32[1,128], index: 4, kind: input, shape index: {}]
  %s5 = inlined_call_operand.vmem [shape: f32[16,128], index: 5, kind: output, shape index: {}]
  %s6 = sld [smem:[#allocation0]]
  $region38: #{feed_forward.1} parent=0
    _
  %s8 = ssub.s32 1, %s6
  %s9 = scalar_select 0, %s8, %s6
  // Predicated region
  $region2: #{feed_forward.1} parent=0 // pred_check
    _
  $region3: #{feed_forward.1} parent=0 // pred_check_branch
    %11 = sbr.rel (0) target = $region5
  $region4: #{feed_forward.1} parent=0 // pred_region
    _
  $region5: #{feed_forward.1} parent=0 // pred_fallthru
    _
  // Predicated region
  $region6: #{feed_forward.1} parent=0 // pred_check
    _
  $region7: #{feed_forward.1} parent=0 // pred_check_branch
    %13 = sbr.rel (0) target = $region9
  $region8: #{feed_forward.1} parent=0 // pred_region
    _
  $region9: #{feed_forward.1} parent=0 // pred_fallthru
    _
  // Predicated region
  $region10: #{feed_forward.1} parent=0 // pred_check
    _
  $region11: #{feed_forward.1} parent=0 // pred_check_branch
    %15 = sbr.rel (0) target = $region13
  $region12: #{feed_forward.1} parent=0 // pred_region
    _
  $region13: #{feed_forward.1} parent=0 // pred_fallthru
    _
  // Predicated region
  $region14: #{feed_forward.1} parent=0 // pred_check
    _
  $region15: #{feed_forward.1} parent=0 // pred_check_branch
    %17 = sbr.rel (0) target = $region17
  $region16: #{feed_forward.1} parent=0 // pred_region
    _
  $region17: #{feed_forward.1} parent=0 // pred_fallthru
    _
  // Predicated region
  $region18: #{feed_forward.1} parent=0 // pred_check
    _
  $region19: #{feed_forward.1} parent=0 // pred_check_branch
    %19 = sbr.rel (0) target = $region21
  $region20: #{feed_forward.1} parent=0 // pred_region
    _
  $region21: #{feed_forward.1} parent=0 // pred_fallthru
    _
  %p20 = scmp.eq.s32.totalorder 0, 0
  // Predicated region
  $region22: #{feed_forward.1} parent=0 // pred_check
    %p21 = pneg %p20
  $region23: #{feed_forward.1} parent=0 // pred_check_branch
    %23 = sbr.rel (%p21) target = $region25
  $region24: #{feed_forward.1} parent=0 // pred_region
    %v24 = vld [vmem:[%s4] sm:$0x1]
    %v26 = vlaneseq
    %v27 = vshrl.u32 %v26, 7
    %v28 = vsub.s32 0, %v27
    %v29 = vrot.slane %v24, %v28
    %31 = vst [vmem:[#allocation2] sm:$0xff] %v29
    %32 = vst [vmem:[#allocation2 + $0x8] sm:$0xff] %v29
  $region25: #{feed_forward.1} parent=0 // pred_fallthru
    _
  %v33 = vld [vmem:[%s0] sm:$0xff]
  %v34 = vld [vmem:[%s0 + $0x8] sm:$0xff]
  %v35 = vld [vmem:[%s1] sm:$0xff]
  %v36 = vld [vmem:[%s1 + $0x8] sm:$0xff]
  %v37 = vld [vmem:[%s1 + $0x10] sm:$0xff]
  %v38 = vld [vmem:[%s1 + $0x18] sm:$0xff]
  %v39 = vld [vmem:[%s1 + $0x20] sm:$0xff]
  %v40 = vld [vmem:[%s1 + $0x28] sm:$0xff]
  %v41 = vld [vmem:[%s1 + $0x30] sm:$0xff]
  %v42 = vld [vmem:[%s1 + $0x38] sm:$0xff]
  %v43 = vld [vmem:[%s1 + $0x40] sm:$0xff]
  %v44 = vld [vmem:[%s1 + $0x48] sm:$0xff]
  %v45 = vld [vmem:[%s1 + $0x50] sm:$0xff]
  %v46 = vld [vmem:[%s1 + $0x58] sm:$0xff]
  %v47 = vld [vmem:[%s1 + $0x60] sm:$0xff]
  %v48 = vld [vmem:[%s1 + $0x68] sm:$0xff]
  %v49 = vld [vmem:[%s1 + $0x70] sm:$0xff]
  %v50 = vld [vmem:[%s1 + $0x78] sm:$0xff]
  %v51 = vld [vmem:[%s1 + $0x80] sm:$0xff]
  %v52 = vld [vmem:[%s1 + $0x88] sm:$0xff]
  %v53 = vld [vmem:[%s1 + $0x90] sm:$0xff]
  %v54 = vld [vmem:[%s1 + $0x98] sm:$0xff]
  %v55 = vld [vmem:[%s1 + $0xa0] sm:$0xff]
  %v56 = vld [vmem:[%s1 + $0xa8] sm:$0xff]
  %v57 = vld [vmem:[%s1 + $0xb0] sm:$0xff]
  %v58 = vld [vmem:[%s1 + $0xb8] sm:$0xff]
  %v59 = vld [vmem:[%s1 + $0xc0] sm:$0xff]
  %v60 = vld [vmem:[%s1 + $0xc8] sm:$0xff]
  %v61 = vld [vmem:[%s1 + $0xd0] sm:$0xff]
  %v62 = vld [vmem:[%s1 + $0xd8] sm:$0xff]
  %v63 = vld [vmem:[%s1 + $0xe0] sm:$0xff]
  %v64 = vld [vmem:[%s1 + $0xe8] sm:$0xff]
  %v65 = vld [vmem:[%s1 + $0xf0] sm:$0xff]
  %v66 = vld [vmem:[%s1 + $0xf8] sm:$0xff]
  %v67 = vld [vmem:[%s2] sm:$0x3]
  %v69 = vlaneseq
  %v70 = vshrl.u32 %v69, 7
  %v71 = vsub.s32 0, %v70
  %v72 = vrot.slane %v67, %v71
  %v73 = vlaneseq
  %v74 = vshrl.u32 %v73, 7
  %v75 = vsub.s32 1, %v74
  %v76 = vrot.slane %v67, %v75
  %79 = vmatprep.subr.mxu0 %v36
  %80 = vmatpush1.msra.mxu0 %v35
  %81 = vmatprep.subr.mxu0 %v38
  %82 = vmatpush1.msra.mxu0 %v37
  %83 = vmatprep.subr.mxu0 %v40
  %84 = vmatpush1.msra.mxu0 %v39
  %85 = vmatprep.subr.mxu0 %v42
  %86 = vmatpush1.msra.mxu0 %v41
  %87 = vmatprep.subr.mxu0 %v44
  %88 = vmatpush1.msra.mxu0 %v43
  %89 = vmatprep.subr.mxu0 %v46
  %90 = vmatpush1.msra.mxu0 %v45
  %91 = vmatprep.subr.mxu0 %v48
  %92 = vmatpush1.msra.mxu0 %v47
  %93 = vmatprep.subr.mxu0 %v50
  %94 = vmatpush1.msra.mxu0 %v49
  %95 = vmatprep.subr.mxu0 %v52
  %96 = vmatpush1.msra.mxu0 %v51
  %97 = vmatprep.subr.mxu0 %v54
  %98 = vmatpush1.msra.mxu0 %v53
  %99 = vmatprep.subr.mxu0 %v56
  %100 = vmatpush1.msra.mxu0 %v55
  %101 = vmatprep.subr.mxu0 %v58
  %102 = vmatpush1.msra.mxu0 %v57
  %103 = vmatprep.subr.mxu0 %v60
  %104 = vmatpush1.msra.mxu0 %v59
  %105 = vmatprep.subr.mxu0 %v62
  %106 = vmatpush1.msra.mxu0 %v61
  %107 = vmatprep.subr.mxu0 %v64
  %108 = vmatpush1.msra.mxu0 %v63
  %109 = vmatprep.subr.mxu0 %v66
  %110 = vmatpush1.msra.mxu0 %v65
  %111 = vmatprep.subr.mxu0 0.0
  %112 = vmatpush1.msra.mxu0 0.0
  %113 = vmatprep.subr.mxu0 0.0
  %114 = vmatpush1.msra.mxu0 0.0
  %115 = vmatprep.subr.mxu0 0.0
  %116 = vmatpush1.msra.mxu0 0.0
  %117 = vmatprep.subr.mxu0 0.0
  %118 = vmatpush1.msra.mxu0 0.0
  %119 = vmatprep.subr.mxu0 0.0
  %120 = vmatpush1.msra.mxu0 0.0
  %121 = vmatprep.subr.mxu0 0.0
  %122 = vmatpush1.msra.mxu0 0.0
  %123 = vmatprep.subr.mxu0 0.0
  %124 = vmatpush1.msra.mxu0 0.0
  %125 = vmatprep.subr.mxu0 0.0
  %126 = vmatpush1.msra.mxu0 0.0
  %127 = vmatprep.subr.mxu0 0.0
  %128 = vmatpush1.msra.mxu0 0.0
  %129 = vmatprep.subr.mxu0 0.0
  %130 = vmatpush1.msra.mxu0 0.0
  %131 = vmatprep.subr.mxu0 0.0
  %132 = vmatpush1.msra.mxu0 0.0
  %133 = vmatprep.subr.mxu0 0.0
  %134 = vmatpush1.msra.mxu0 0.0
  %135 = vmatprep.subr.mxu0 0.0
  %136 = vmatpush1.msra.mxu0 0.0
  %137 = vmatprep.subr.mxu0 0.0
  %138 = vmatpush1.msra.mxu0 0.0
  %139 = vmatprep.subr.mxu0 0.0
  %140 = vmatpush1.msra.mxu0 0.0
  %141 = vmatprep.subr.mxu0 0.0
  %142 = vmatpush1.msra.mxu0 0.0
  %143 = vmatprep.mubr.f32.mxu0 0.0
  %144 = vmatmul.mubr.f32.gmra.mrb[0].mxu0 %v33
  %v145 = vpop.f32.mrb[0].mxu0
  %v146 = vadd.f32 %v72, %v145
  %v147 = vpop.f32.mrb[0].mxu0
  %v148 = vadd.f32 %v76, %v147
  %149 = vmatprep.mubr.f32.mxu0 0.0
  %150 = vmatmul.mubr.f32.gmra.mrb[0].mxu0 %v34
  %v151 = vpop.f32.mrb[0].mxu0
  %v152 = vadd.f32 %v72, %v151
  %v153 = vpop.f32.mrb[0].mxu0
  %v154 = vadd.f32 %v76, %v153
  %155 = vdwg.mxu0
  %v156 = vmax.f32 %v146, 0.0
  %v157 = vmax.f32 %v148, 0.0
  %v158 = vmax.f32 %v152, 0.0
  %v159 = vmax.f32 %v154, 0.0
  %v160 = vld [vmem:[#allocation2] sm:$0xff]
  %v161 = vld [vmem:[#allocation2 + $0x8] sm:$0xff]
  %v162 = vld [vmem:[%s3] sm:$0xff]
  %v163 = vld [vmem:[%s3 + $0x8] sm:$0xff]
  %v164 = vld [vmem:[%s3 + $0x10] sm:$0xff]
  %v165 = vld [vmem:[%s3 + $0x18] sm:$0xff]
  %v166 = vld [vmem:[%s3 + $0x20] sm:$0xff]
  %v167 = vld [vmem:[%s3 + $0x28] sm:$0xff]
  %v168 = vld [vmem:[%s3 + $0x30] sm:$0xff]
  %v169 = vld [vmem:[%s3 + $0x38] sm:$0xff]
  %v170 = vld [vmem:[%s3 + $0x40] sm:$0xff]
  %v171 = vld [vmem:[%s3 + $0x48] sm:$0xff]
  %v172 = vld [vmem:[%s3 + $0x50] sm:$0xff]
  %v173 = vld [vmem:[%s3 + $0x58] sm:$0xff]
  %v174 = vld [vmem:[%s3 + $0x60] sm:$0xff]
  %v175 = vld [vmem:[%s3 + $0x68] sm:$0xff]
  %v176 = vld [vmem:[%s3 + $0x70] sm:$0xff]
  %v177 = vld [vmem:[%s3 + $0x78] sm:$0xff]
  %v178 = vld [vmem:[%s3 + $0x80] sm:$0xff]
  %v179 = vld [vmem:[%s3 + $0x88] sm:$0xff]
  %v180 = vld [vmem:[%s3 + $0x90] sm:$0xff]
  %v181 = vld [vmem:[%s3 + $0x98] sm:$0xff]
  %v182 = vld [vmem:[%s3 + $0xa0] sm:$0xff]
  %v183 = vld [vmem:[%s3 + $0xa8] sm:$0xff]
  %v184 = vld [vmem:[%s3 + $0xb0] sm:$0xff]
  %v185 = vld [vmem:[%s3 + $0xb8] sm:$0xff]
  %v186 = vld [vmem:[%s3 + $0xc0] sm:$0xff]
  %v187 = vld [vmem:[%s3 + $0xc8] sm:$0xff]
  %v188 = vld [vmem:[%s3 + $0xd0] sm:$0xff]
  %v189 = vld [vmem:[%s3 + $0xd8] sm:$0xff]
  %v190 = vld [vmem:[%s3 + $0xe0] sm:$0xff]
  %v191 = vld [vmem:[%s3 + $0xe8] sm:$0xff]
  %v192 = vld [vmem:[%s3 + $0xf0] sm:$0xff]
  %v193 = vld [vmem:[%s3 + $0xf8] sm:$0xff]
  %194 = vmatprep.subr.mxu0 0.0
  %195 = vmatpush1.msra.mxu0 %v162
  %196 = vmatprep.subr.mxu0 0.0
  %197 = vmatpush1.msra.mxu0 %v163
  %198 = vmatprep.subr.mxu0 0.0
  %199 = vmatpush1.msra.mxu0 %v164
  %200 = vmatprep.subr.mxu0 0.0
  %201 = vmatpush1.msra.mxu0 %v165
  %202 = vmatprep.subr.mxu0 0.0
  %203 = vmatpush1.msra.mxu0 %v166
  %204 = vmatprep.subr.mxu0 0.0
  %205 = vmatpush1.msra.mxu0 %v167
  %206 = vmatprep.subr.mxu0 0.0
  %207 = vmatpush1.msra.mxu0 %v168
  %208 = vmatprep.subr.mxu0 0.0
  %209 = vmatpush1.msra.mxu0 %v169
  %210 = vmatprep.subr.mxu0 0.0
  %211 = vmatpush1.msra.mxu0 %v170
  %212 = vmatprep.subr.mxu0 0.0
  %213 = vmatpush1.msra.mxu0 %v171
  %214 = vmatprep.subr.mxu0 0.0
  %215 = vmatpush1.msra.mxu0 %v172
  %216 = vmatprep.subr.mxu0 0.0
  %217 = vmatpush1.msra.mxu0 %v173
  %218 = vmatprep.subr.mxu0 0.0
  %219 = vmatpush1.msra.mxu0 %v174
  %220 = vmatprep.subr.mxu0 0.0
  %221 = vmatpush1.msra.mxu0 %v175
  %222 = vmatprep.subr.mxu0 0.0
  %223 = vmatpush1.msra.mxu0 %v176
  %224 = vmatprep.subr.mxu0 0.0
  %225 = vmatpush1.msra.mxu0 %v177
  %226 = vmatprep.subr.mxu0 0.0
  %227 = vmatpush1.msra.mxu0 %v178
  %228 = vmatprep.subr.mxu0 0.0
  %229 = vmatpush1.msra.mxu0 %v179
  %230 = vmatprep.subr.mxu0 0.0
  %231 = vmatpush1.msra.mxu0 %v180
  %232 = vmatprep.subr.mxu0 0.0
  %233 = vmatpush1.msra.mxu0 %v181
  %234 = vmatprep.subr.mxu0 0.0
  %235 = vmatpush1.msra.mxu0 %v182
  %236 = vmatprep.subr.mxu0 0.0
  %237 = vmatpush1.msra.mxu0 %v183
  %238 = vmatprep.subr.mxu0 0.0
  %239 = vmatpush1.msra.mxu0 %v184
  %240 = vmatprep.subr.mxu0 0.0
  %241 = vmatpush1.msra.mxu0 %v185
  %242 = vmatprep.subr.mxu0 0.0
  %243 = vmatpush1.msra.mxu0 %v186
  %244 = vmatprep.subr.mxu0 0.0
  %245 = vmatpush1.msra.mxu0 %v187
  %246 = vmatprep.subr.mxu0 0.0
  %247 = vmatpush1.msra.mxu0 %v188
  %248 = vmatprep.subr.mxu0 0.0
  %249 = vmatpush1.msra.mxu0 %v189
  %250 = vmatprep.subr.mxu0 0.0
  %251 = vmatpush1.msra.mxu0 %v190
  %252 = vmatprep.subr.mxu0 0.0
  %253 = vmatpush1.msra.mxu0 %v191
  %254 = vmatprep.subr.mxu0 0.0
  %255 = vmatpush1.msra.mxu0 %v192
  %256 = vmatprep.subr.mxu0 0.0
  %257 = vmatpush1.msra.mxu0 %v193
  %258 = vmatprep.mubr.f32.mxu0 %v157
  %259 = vmatmul.mubr.f32.gmra.mrb[0].mxu0 %v156
  %v260 = vpop.f32.mrb[0].mxu0
  %v261 = vadd.f32 0.0, %v260
  %v262 = vpop.f32.mrb[0].mxu0
  %263 = vmatprep.mubr.f32.mxu0 %v159
  %264 = vmatmul.mubr.f32.gmra.mrb[0].mxu0 %v158
  %v265 = vpop.f32.mrb[0].mxu0
  %v266 = vadd.f32 0.0, %v265
  %v267 = vpop.f32.mrb[0].mxu0
  %268 = vdwg.mxu0
  %v269 = vadd.f32 %v160, %v261
  %v270 = vadd.f32 %v161, %v266
  %271 = vst [vmem:[#allocation2] sm:$0xff] %v269
  %272 = vst [vmem:[#allocation2 + $0x8] sm:$0xff] %v270
  // Predicated region
  $region26: #{feed_forward.1} parent=0 // pred_check
    %p273 = pneg %p20
  $region27: #{feed_forward.1} parent=0 // pred_check_branch
    %275 = sbr.rel (%p273) target = $region29
  $region28: #{feed_forward.1} parent=0 // pred_region
    %v276 = vld [vmem:[#allocation2] sm:$0xff]
    %v277 = vld [vmem:[#allocation2 + $0x8] sm:$0xff]
    %278 = vst [vmem:[%s5] sm:$0xff] %v276
    %279 = vst [vmem:[%s5 + $0x8] sm:$0xff] %v277
  $region29: #{feed_forward.1} parent=0 // pred_fallthru
    _
  // Predicated region
  $region30: #{feed_forward.1} parent=0 // pred_check
    _
  $region31: #{feed_forward.1} parent=0 // pred_check_branch
    %281 = sbr.rel (0) target = $region33
  $region32: #{feed_forward.1} parent=0 // pred_region
    _
  $region33: #{feed_forward.1} parent=0 // pred_fallthru
    _
  // Predicated region
  $region34: #{feed_forward.1} parent=0 // pred_check
    _
  $region35: #{feed_forward.1} parent=0 // pred_check_branch
    %283 = sbr.rel (0) target = $region37
  $region36: #{feed_forward.1} parent=0 // pred_region
    _
  $region37: #{feed_forward.1} parent=0 // pred_fallthru
    _

</llo_original>
